<compile_context>
chip_gen: v6e
topology: v6e:2x2x1
jax: 0.10.0
libtpu: 0.0.40
codegen_flags: <defaults>
</compile_context>

<pallas_src>
import jax
import jax.numpy as jnp
from jax import lax
from jax.experimental import pallas as pl
from jax.experimental.pallas import tpu as pltpu


def _vmem_capacity_bytes():
    """Physical VMEM per TensorCore; conservative v7x default if unknown."""
    default = 64 * 1024 * 1024
    try:
        info = pltpu.get_tpu_info()
    except Exception:
        return default
    cap = getattr(info, "vmem_capacity_bytes", None)
    try:
        cap = int(cap)
    except (TypeError, ValueError):
        return default
    return cap if cap > 0 else default


def _choose_tiles(b, features, cols, target_bytes, itemsize=4):
    """Pick (TB, TF, TC) for the (TB, TF, TC) output block.

    TF is a multiple of 8 (or the full feature extent) capped at 64 so the
    in-kernel lane-chunked stores stay well inside the 64-vreg file.  TC is a
    multiple of 128 (or the full H*W extent).  TB folds batch into the block
    to amortize per-grid-step overhead.  The grid is kept at >= 2 steps when
    possible so v7x's two TensorCores both get work.
    """
    # Feature tile.
    tf = features if features <= 64 else 64
    # Cols (H*W) tile: full extent if it fits the block budget, else 128-aligned.
    if tf * cols * itemsize <= target_bytes or cols < 128:
        tc = cols
    else:
        tc = (target_bytes // (tf * itemsize)) // 128 * 128
        tc = max(128, min(tc, (cols // 128) * 128))
    # Batch tile.
    tb = max(1, min(b, target_bytes // max(1, tf * tc * itemsize)))

    def n_steps(tb_, tf_, tc_):
        return pl.cdiv(b, tb_) * pl.cdiv(features, tf_) * pl.cdiv(cols, tc_)

    if n_steps(tb, tf, tc) < 2:          # keep both v7x TensorCores busy
        if b >= 2:
            tb = (b + 1) // 2
        elif features >= 16:
            tf = max(8, (((features + 1) // 2) + 7) // 8 * 8)
        elif cols >= 256:
            tc = (((cols + 1) // 2) + 127) // 128 * 128
    return int(tb), int(tf), int(tc)


def _make_kernel(b_total, tb, tf, tc):
    """Build the kernel body for static tile sizes (TB, TF, TC)."""
    # Lane-chunk size: each broadcast+store touches <= 32K f32 (<= 32 vregs).
    if tc <= 128:
        cc = tc
    else:
        cc = max(128, min(tc, (32768 // max(tf, 1)) // 128 * 128))
    n_full = tc // cc
    rem = tc - n_full * cc
    half_pi = float(jnp.pi) * 0.5

    def kernel(t_ref, o_ref):
        # t_ref: (B,) f32 in SMEM (full array, shared by all grid steps)
        # o_ref: (TB, TF, TC) f32 output block in VMEM
        bi = pl.program_id(0)            # batch-block index
        fi = pl.program_id(1)            # feature-block index
        # pl.program_id(2) (cols block) is unused: values are constant in H*W.

        c_loc = lax.broadcasted_iota(jnp.int32, (tf, 1), 0)        # (TF, 1)
        c_glb = c_loc + fi * tf                                    # global chan
        odd = (c_glb & 1) == 1
        cof = 2.0 * c_glb.astype(jnp.float32) + 1.0                # exact ints

        for i in range(tb):              # static unroll over batch rows
            # Clamp so padded edge batch blocks read a valid t; their rows are
            # dropped on writeback anyway.
            idx = jnp.minimum(bi * tb + i, b_total - 1)
            t_val = t_ref[idx]                                     # SMEM scalar
            # Same association order as the reference: (t * pi/2) * (2c + 1).
            phase = (t_val * half_pi) * cof                        # (TF, 1)
            val = jnp.where(odd, jnp.cos(phase), jnp.sin(phase))   # (TF, 1)
            # Lane-chunked broadcast stores: full-width vst, no vreg spills.
            for j in range(n_full):
                o_ref[i, :, j * cc:(j + 1) * cc] = jnp.broadcast_to(val, (tf, cc))
            if rem:
                o_ref[i, :, n_full * cc:tc] = jnp.broadcast_to(val, (tf, rem))

    return kernel


def time_emb(t, features, space_dim):
    """Pallas TimeEmb: t (B,) -> (B, features, H, W) f32 (NCHW, like PyTorch)."""
    h, w = space_dim
    b = t.shape[0]
    cols = h * w
    t_f32 = t.astype(jnp.float32).reshape(b)

    vmem_cap = _vmem_capacity_bytes()                 # generation-aware budget
    vmem_limit = min(vmem_cap * 3 // 4, 96 * 1024 * 1024)
    target_bytes = max(1 << 20, min(4 << 20, vmem_limit // 4))

    tb, tf, tc = _choose_tiles(b, features, cols, target_bytes)
    grid = (pl.cdiv(b, tb), pl.cdiv(features, tf), pl.cdiv(cols, tc))

    out_flat = pl.pallas_call(
        _make_kernel(b, tb, tf, tc),
        out_shape=jax.ShapeDtypeStruct((b, features, cols), jnp.float32),
        grid=grid,
        in_specs=[pl.BlockSpec(memory_space=pltpu.MemorySpace.SMEM)],
        out_specs=pl.BlockSpec((tb, tf, tc), lambda bi, fi, ci: (bi, fi, ci)),
        compiler_params=pltpu.CompilerParams(
            dimension_semantics=("parallel", "parallel", "parallel"),
            vmem_limit_bytes=int(vmem_limit)),
        cost_estimate=pl.CostEstimate(
            flops=4 * b * features,
            transcendentals=2 * b * features,
            bytes_accessed=b * features * cols * 4 + b * 4),
    )(t_f32)

    # Free, contiguous row-major reshape back to NCHW.
    return out_flat.reshape(b, features, h, w)


def time_emb_ref(t, features, space_dim):
    """Pure-JAX reference mirroring the PyTorch module."""
    h, w = space_dim
    b = t.shape[0]
    coef = jnp.arange(features, dtype=jnp.float32) * 2.0 + 1.0      # (F,)
    phase = t.astype(jnp.float32)[:, None] * (jnp.pi / 2.0) * coef  # (B, F)
    even = (jnp.arange(features) % 2) == 0
    val = jnp.where(even[None, :], jnp.sin(phase), jnp.cos(phase))  # (B, F)
    return jnp.broadcast_to(val[:, :, None, None], (b, features, h, w))


if __name__ == "__main__":
    key = jax.random.PRNGKey(0)

    # Primary case (typical classifier usage).
    B, FEATURES, H, W = 2, 32, 16, 16
    t = jax.random.uniform(key, (B,), dtype=jnp.float32)
    out = jax.block_until_ready(time_emb(t, FEATURES, (H, W)))
    ref = time_emb_ref(t, FEATURES, (H, W))
    assert out.shape == (B, FEATURES, H, W)
    assert out.dtype == jnp.float32
    # Phases are computed with the same f32 association order as the reference
    # (bit-identical arguments); the tolerance only absorbs sin/cos
    # implementation deltas between the Mosaic and XLA lowerings at |x| ~ 1e2.
    assert jnp.allclose(out, ref, atol=3e-5, rtol=1e-5)

    # Non-aligned shapes: odd feature count, H*W not a multiple of 128, batch
    # not divisible by the batch tile (exercises full-extent / partial blocks).
    B2, F2, H2, W2 = 3, 7, 5, 5
    t2 = jax.random.uniform(jax.random.PRNGKey(1), (B2,), dtype=jnp.float32)
    out2 = jax.block_until_ready(time_emb(t2, F2, (H2, W2)))
    ref2 = time_emb_ref(t2, F2, (H2, W2))
    assert jnp.allclose(out2, ref2, atol=3e-5, rtol=1e-5)

    # Larger case: exercises batch folding into the block and lane-chunked stores.
    B3, F3, H3, W3 = 4, 64, 32, 32
    t3 = jax.random.uniform(jax.random.PRNGKey(2), (B3,), dtype=jnp.float32)
    out3 = jax.block_until_ready(time_emb(t3, F3, (H3, W3)))
    ref3 = time_emb_ref(t3, F3, (H3, W3))
    assert jnp.allclose(out3, ref3, atol=3e-5, rtol=1e-5)

    print("KERNEL_OK")
</pallas_src>

<mosaic_0001>
module attributes {stable_mosaic.version = 11 : i64} {
  func.func @kernel(%arg0: i32, %arg1: i32, %arg2: i32, %arg3: memref<2xf32, #tpu.memory_space<smem>>, %arg4: memref<1x32x256xf32, #tpu.memory_space<vmem>>) attributes {dimension_semantics = [#tpu.dimension_semantics<parallel>, #tpu.dimension_semantics<parallel>, #tpu.dimension_semantics<parallel>], iteration_bounds = array<i64: 2, 1, 1>, scalar_prefetch = 0 : i64, scratch_operands = 0 : i64, tpu.core_type = #tpu.core_type<tc>, window_params = [{transform_indices = @transform_0, window_bounds = array<i64: 2>}, {transform_indices = @transform_1, window_bounds = array<i64: 1, 32, 256>}]} {
    %0 = tpu.iota {dimensions = array<i32: 0>} : vector<32x1xi32>
    %c32_i32 = arith.constant 32 : i32
    %1 = arith.muli %arg1, %c32_i32 : i32
    %2 = vector.broadcast %1 : i32 to vector<32x1xi32>
    %3 = arith.addi %0, %2 : vector<32x1xi32>
    %c1_i32 = arith.constant 1 : i32
    %4 = vector.broadcast %c1_i32 : i32 to vector<32x1xi32>
    %5 = arith.andi %3, %4 : vector<32x1xi32>
    %c1_i32_0 = arith.constant 1 : i32
    %6 = vector.broadcast %c1_i32_0 : i32 to vector<32x1xi32>
    %7 = arith.cmpi eq, %5, %6 : vector<32x1xi32>
    %8 = arith.sitofp %3 : vector<32x1xi32> to vector<32x1xf32>
    %cst = arith.constant 2.000000e+00 : f32
    %9 = vector.broadcast %cst : f32 to vector<32x1xf32>
    %10 = arith.mulf %9, %8 : vector<32x1xf32>
    %cst_1 = arith.constant 1.000000e+00 : f32
    %11 = vector.broadcast %cst_1 : f32 to vector<32x1xf32>
    %12 = arith.addf %10, %11 : vector<32x1xf32>
    %c1_i32_2 = arith.constant 1 : i32
    %13 = arith.muli %arg0, %c1_i32_2 : i32
    %c0_i32 = arith.constant 0 : i32
    %14 = arith.addi %13, %c0_i32 : i32
    %c1_i32_3 = arith.constant 1 : i32
    %15 = arith.minsi %14, %c1_i32_3 : i32
    %16 = arith.index_cast %15 : i32 to index
    %17 = memref.load %arg3[%16] : memref<2xf32, #tpu.memory_space<smem>>
    %cst_4 = arith.constant 1.57079637 : f32
    %18 = arith.mulf %17, %cst_4 : f32
    %19 = vector.broadcast %18 : f32 to vector<32x1xf32>
    %20 = arith.mulf %19, %12 : vector<32x1xf32>
    %21 = math.cos %20 : vector<32x1xf32>
    %22 = math.sin %20 : vector<32x1xf32>
    %23 = arith.select %7, %21, %22 : vector<32x1xi1>, vector<32x1xf32>
    %24 = vector.shape_cast %23 : vector<32x1xf32> to vector<32x1xf32>
    %25 = vector.broadcast %24 : vector<32x1xf32> to vector<32x256xf32>
    %c0 = arith.constant 0 : index
    %c0_5 = arith.constant 0 : index
    %c0_6 = arith.constant 0 : index
    %26 = vector.load %arg4[%c0, %c0_5, %c0_6] : memref<1x32x256xf32, #tpu.memory_space<vmem>>, vector<1x32x256xf32>
    %27 = vector.shape_cast %26 : vector<1x32x256xf32> to vector<32x256xf32>
    %28 = vector.shape_cast %25 : vector<32x256xf32> to vector<1x32x256xf32>
    tpu.vector_store %arg4[%c0, %c0_5, %c0_6], %28 {strides = array<i32>} : memref<1x32x256xf32, #tpu.memory_space<vmem>>, vector<1x32x256xf32>,
    return
  }
  func.func @transform_0(%arg0: i32, %arg1: i32, %arg2: i32) -> i32 {
    %c0_i32 = arith.constant 0 : i32
    %c0_i32_0 = arith.constant 0 : i32
    return %c0_i32 : i32
  }
  func.func @transform_1(%arg0: i32, %arg1: i32, %arg2: i32) -> (i32, i32, i32) {
    %c0_i32 = arith.constant 0 : i32
    return %arg0, %arg1, %arg2 : i32, i32, i32
  }
}

</mosaic_0001>

<llo_original>
// kernel: tpu_custom_call.1
$region0: #{tpu_custom_call.1}
  #allocation0 [shape = 'u32[]', space=smem, size = 0x4, offset = 0x4, fixed_abs, tag = 'smem constant byte address 0x4 - core index']
  #allocation1 [shape = 'u32[144,128]{1,0:T(1,128)}', space=vmem, size = 0x12000, scoped, tag = 'internal scratch']
  %s0 = inlined_call_operand.hbm [shape: f32[2], index: 0, kind: input, shape index: {}]
  %s1 = inlined_call_operand.hbm [shape: f32[2,32,256], index: 1, kind: output, shape index: {}]
  %s2 = sld [smem:[#allocation0]]
  $region41: #{tpu_custom_call.1} parent=0
    _
  %s4 = ssub.s32 1, %s2
  %s5 = scalar_select 0, %s4, %s2
  $region1: #{tpu_custom_call.1} parent=0
    #allocation2 [shape = 'u8[512]{0}', space=smem, size = 0x200, scoped, tag = 'input window, operand 0, single buffered']
    #allocation3 [shape = 's32[2]{0}', space=sflag, size = 0x8, scoped, tag = 'scoped memory for tpu_custom_call.1']
    #allocation4 [shape = 's32[2]{0}', space=sflag, size = 0x8, scoped, tag = 'scoped memory for tpu_custom_call.1']
    #allocation5 [shape = 'u8[65536]{0}', space=vmem, size = 0x10000, scoped, tag = 'output window, operand 0']
    %6 = vsyncpa [#allocation4], 0
    %7 = vsyncpa [#allocation3], 0
    %s8 = scalar_lea.sflag [#allocation3], 1
    %9 = vsyncpa %s8, 0
    loop: start=0, step=1, limit=4
    $region2: #{tpu_custom_call.1} parent=1 // loop_pre_header
      _
    $region3: #{tpu_custom_call.1} parent=1 // loop_header
      %s11 = sphi 0, %s15
      %p12 = scmp.ge.s32.totalorder %s11, 4
      %s18 = sphi 0, %s37
      %s19 = sphi 0, %s33
      %s20 = sphi 0, %s29
      %s21 = sphi 0, %s18
      %s22 = sphi 0, %s19
      %s23 = sphi 0, %s20
      %s24 = sphi 0, %s21
      %s25 = sphi 0, %s22
      %s26 = sphi 0, %s23
      %s38 = sphi 0, %s38
      %s40 = sphi 0, %s38
      %s41 = sphi 0, %s40
      %s55 = sphi 0, %s41
      %s65 = sphi 0, %s67
      %s68 = sphi 0, %s65
      %s69 = sphi 0, %s68
      %s85 = sphi 0, %s69
    $region4: #{tpu_custom_call.1} parent=1 // loop_header_branch
      %14 = sbr.rel (%p12) target = $region8
    $region5: #{tpu_custom_call.1} parent=1 // loop_body
      %s16 = ssub.s32 %s11, 1
      %s17 = ssub.s32 %s11, 2
      %s27 = sadd.s32 1, %s20
      %p28 = scmp.ge.s32.totalorder %s27, 1
      %s29 = scalar_select %p28, 0, %s27
      %s30 = sadd.s32 1, %s19
      %s31 = scalar_select %p28, %s30, %s19
      %p32 = scmp.ge.s32.totalorder %s31, 1
      %s33 = scalar_select %p32, 0, %s31
      %s34 = sadd.s32 1, %s18
      %s35 = scalar_select %p32, %s34, %s18
      %p36 = scmp.ge.s32.totalorder %s35, 2
      %s37 = scalar_select %p36, 0, %s35
      %s39 = sadd.s32 %s38, 1
      %p42 = scmp.eq.s32.totalorder %s11, 1
      %p43 = scmp.ne.s32.totalorder %s38, %s40
      %p44 = scmp.eq.s32.totalorder %s11, 0
      %p45 = por %p43, %p44
      %p46 = scmp.ne.s32.totalorder %s38, %s40
      %p47 = scmp.eq.s32.totalorder %s16, 1
      %p48 = por %p46, %p47
      %p49 = scmp.ne.s32.totalorder %s40, %s41
      %p50 = scmp.eq.s32.totalorder %s16, 0
      %p51 = por %p49, %p50
      %p52 = scmp.ne.s32.totalorder %s40, %s41
      %p53 = scmp.eq.s32.totalorder %s17, 1
      %p54 = por %p52, %p53
      %p56 = scmp.ne.s32.totalorder %s41, %s55
      %p57 = scmp.eq.s32.totalorder %s17, 0
      %p58 = por %p56, %p57
      %s59 = ssub.s32 %s18, %s37
      %s60 = ssub.s32 %s19, %s33
      %s61 = sor.u32 %s59, %s60
      %s62 = ssub.s32 %s20, %s29
      %s63 = sor.u32 %s61, %s62
      %p64 = scmp.eq.s32.totalorder %s63, 0
      %s66 = sadd.s32 %s65, 1
      %s67 = scalar_select %p64, %s65, %s66
      %p70 = pneg %p64
      %p71 = scmp.eq.s32.totalorder %s11, 1
      %p72 = por %p70, %p71
      %p73 = scmp.ne.s32.totalorder %s65, %s68
      %p74 = scmp.eq.s32.totalorder %s11, 0
      %p75 = por %p73, %p74
      %p76 = scmp.ne.s32.totalorder %s65, %s68
      %p77 = scmp.eq.s32.totalorder %s16, 1
      %p78 = por %p76, %p77
      %p79 = scmp.ne.s32.totalorder %s68, %s69
      %p80 = scmp.eq.s32.totalorder %s16, 0
      %p81 = por %p79, %p80
      %p82 = scmp.ne.s32.totalorder %s68, %s69
      %p83 = scmp.eq.s32.totalorder %s17, 1
      %p84 = por %p82, %p83
      %p86 = scmp.ne.s32.totalorder %s69, %s85
      %p87 = scmp.eq.s32.totalorder %s17, 0
      %p88 = por %p86, %p87
      %p89 = scmp.le.s32.totalorder 1, %s11
      %p90 = scmp.lt.s32.totalorder %s11, 3
      %p91 = pnand %p89, %p90
      %p92 = pneg %p91
      // Predicated region
      $region9: #{tpu_custom_call.1} parent=5 // pred_check
        _
      $region10: #{tpu_custom_call.1} parent=5 // pred_check_branch
        %94 = sbr.rel (%p91) target = $region12
      $region11: #{tpu_custom_call.1} parent=5 // pred_region
        %s95 = ssub.s32 %s11, 1
        // Predicated region
        $region13: #{tpu_custom_call.1} parent=11 // pred_check
          %p96 = pneg %p51
        $region14: #{tpu_custom_call.1} parent=11 // pred_check_branch
          %98 = sbr.rel (%p96) target = $region16
        $region15: #{tpu_custom_call.1} parent=11 // pred_region
          %s100 = ssub.s32 16, 16
          %101 = vsyncadd [#allocation4], %s100
          %104 = dma.hbm_to_smem %s0, 16, [#allocation2], [#allocation4]
        $region16: #{tpu_custom_call.1} parent=11 // pred_fallthru
          _
      $region12: #{tpu_custom_call.1} parent=5 // pred_fallthru
        _
      %p105 = scmp.lt.s32.totalorder %s11, 2
      // Predicated region
      $region17: #{tpu_custom_call.1} parent=5 // pred_check
        %p106 = pneg %p105
      $region18: #{tpu_custom_call.1} parent=5 // pred_check_branch
        %108 = sbr.rel (%p106) target = $region20
      $region19: #{tpu_custom_call.1} parent=5 // pred_region
        _
      $region20: #{tpu_custom_call.1} parent=5 // pred_fallthru
        _
      %p109 = scmp.le.s32.totalorder 1, %s11
      %p110 = scmp.lt.s32.totalorder %s11, 3
      %p111 = pnand %p109, %p110
      %p112 = pneg %p111
      // Predicated region
      $region21: #{tpu_custom_call.1} parent=5 // pred_check
        _
      $region22: #{tpu_custom_call.1} parent=5 // pred_check_branch
        %114 = sbr.rel (%p111) target = $region24
      $region23: #{tpu_custom_call.1} parent=5 // pred_region
        %s115 = ssub.s32 %s11, 1
        // Predicated region
        $region25: #{tpu_custom_call.1} parent=23 // pred_check
          %p116 = pneg %p51
        $region26: #{tpu_custom_call.1} parent=23 // pred_check_branch
          %118 = sbr.rel (%p116) target = $region28
        $region27: #{tpu_custom_call.1} parent=23 // pred_region
          %119 = dma.done [#allocation4], 16
        $region28: #{tpu_custom_call.1} parent=23 // pred_fallthru
          _
        %120 = sfence
        %p121 = pneg %p51
        %p122 = pneg %p48
        %p123 = pneg %p81
        %p124 = pneg %p78
        %s125 = sand.u32 %s68, 1
        %s126 = scalar_lea.sflag [#allocation3], %s125
        %s127 = sand.u32 %s68, 1
        %s128 = smul.addr %s127, 64
        %s129 = scalar_lea.vmem [#allocation5], %s128
        %s130 = smul.u32 4, %s22
        %s131 = smul.u32 2, %s23
        %v132 = vlaneseq
        %v133 = vshrl.u32 %v132, 7
        %v134 = vadd.s32 %v133, 8
        %v135 = vadd.s32 %v133, 16
        %v136 = vadd.s32 %v133, 24
        %s137 = smul.u32 %s22, 32
        %v138 = vstv %s137
        %v139 = vadd.s32 %v133, %v138
        %v140 = vadd.s32 %v134, %v138
        %v141 = vadd.s32 %v135, %v138
        %v142 = vadd.s32 %v136, %v138
        %v143 = vand.u32 %v139, 1
        %v144 = vand.u32 %v140, 1
        %v145 = vand.u32 %v141, 1
        %v146 = vand.u32 %v142, 1
        %vm147 = vcmp.eq.s32.totalorder %v143, 1
        %vm148 = vcmp.eq.s32.totalorder %v144, 1
        %vm149 = vcmp.eq.s32.totalorder %v145, 1
        %vm150 = vcmp.eq.s32.totalorder %v146, 1
        %v151 = vcvt.s32.f32 %v139
        %v152 = vcvt.s32.f32 %v140
        %v153 = vcvt.s32.f32 %v141
        %v154 = vcvt.s32.f32 %v142
        %v155 = vmul.f32 %v151, 2.0
        %v156 = vmul.f32 %v152, 2.0
        %v157 = vmul.f32 %v153, 2.0
        %v158 = vmul.f32 %v154, 2.0
        %v159 = vadd.f32 %v155, 1.0
        %v160 = vadd.f32 %v156, 1.0
        %v161 = vadd.f32 %v157, 1.0
        %v162 = vadd.f32 %v158, 1.0
        %p163 = scmp.lt.s32.totalorder %s21, 1
        %s164 = scalar_select %p163, %s21, 1
        %s165 = sld [smem:[#allocation2 + %s164]]
        %s166 = smul.f32 %s165, 1.5707964
        %v167 = vstv %s166
        %v168 = vmul.f32 %v167, %v159
        %v169 = vmul.f32 %v167, %v160
        %v170 = vmul.f32 %v167, %v161
        %v171 = vmul.f32 %v167, %v162
        %v172 = vand.u32 2147483647, %v168
        %vm173 = vcmp.le.f32.partialorder %v172, 0.7853982
        %vm174 = vcmp.lt.s32.totalorder %v168, 0
        %v175 = vand.u32 %v168, 2139095040
        %v176 = vshrl.u32 %v175, 23
        %v177 = vsub.s32 %v176, 127
        %v178 = vand.u32 2147483647, %v168
        %v179 = vand.u32 %v178, 8388607
        %v180 = vor.u32 %v179, 8388608
        %v181 = vsub.s32 0, %v180
        %v182 = vadd.s32 %v177, 1
        %vm183 = vcmp.gt.s32.totalorder %v182, 0
        %v184 = vsel %vm183, %v182, 0
        %v185 = vshrl.u32 %v184, 5
        %v186 = vand.u32 %v184, 31
        %v187 = vsub.s32 32, %v186
        %v188 = vshrl.u32 683565275, %v187
        %v189 = vshll.u32 683565275, %v186
        %v190 = vshrl.u32 2475754826, %v187
        %v191 = vor.u32 %v189, %v190
        %v192 = vshll.u32 2475754826, %v186
        %v193 = vshrl.u32 2131351028, %v187
        %v194 = vor.u32 %v192, %v193
        %v195 = vshll.u32 2131351028, %v186
        %v196 = vshrl.u32 2102212464, %v187
        %v197 = vor.u32 %v195, %v196
        %v198 = vshll.u32 2102212464, %v186
        %v199 = vshrl.u32 920167782, %v187
        %v200 = vor.u32 %v198, %v199
        %v201 = vshll.u32 920167782, %v186
        %v202 = vshrl.u32 1326507024, %v187
        %v203 = vor.u32 %v201, %v202
        %vm204 = vcmp.lt.s32.totalorder %v185, 1
        %vm205 = vcmp.lt.s32.totalorder %v185, 2
        %vm206 = vcmp.lt.s32.totalorder %v185, 3
        %vm207 = vcmp.lt.s32.totalorder %v185, 4
        %v208 = vsel %vm204, %v188, %v191
        %v209 = vsel %vm207, %v197, 2102212464
        %v210 = vsel %vm206, %v194, %v209
        %v211 = vsel %vm205, %v208, %v210
        %v212 = vsel %vm204, %v191, %v194
        %v213 = vsel %vm207, %v200, 920167782
        %v214 = vsel %vm206, %v197, %v213
        %v215 = vsel %vm205, %v212, %v214
        %v216 = vsel %vm204, %v194, %v197
        %v217 = vsel %vm207, %v203, 1326507024
        %v218 = vsel %vm206, %v200, %v217
        %v219 = vsel %vm205, %v216, %v218
        %v220 = vshll.u32 %v180, 8
        %v221 = vmul.u32.u64.compose %v220, %v219
        %v222 = vextract.low.u32 %v221
        %v223 = vextract.high.u32 %v221
        %v224 = vmul.u32.u64.compose %v220, %v215
        %v225 = vextract.low.u32 %v224
        %v226 = vextract.high.u32 %v224
        %v227 = vmul.u32 %v220, %v211
        %v228 = vadd.s32 %v223, %v225
        %vm229 = vc.u32 %v223, %v225
        %v230 = vadd.s32 %v226, 1
        %v231 = vsel %vm229, %v230, %v226
        %v232 = vadd.s32 %v227, %v231
        %v233 = vadd.s32 %v232, 536870912
        %v234 = vshrl.u32 %v233, 30
        %v235 = vshll.u32 %v234, 30
        %v236 = vsub.s32 %v232, %v235
        %vm237 = vcmp.lt.s32.totalorder %v236, 0
        %v238 = vsub.s32 0, %v236
        %v239 = vsel %vm237, %v238, %v236
        %v240 = vclz %v239
        %v241 = vsub.s32 %v240, 2
        %vm242 = vcmp.gt.s32.totalorder 0, %v241
        %v243 = vsel %vm242, 0, %v241
        %v244 = vsub.s32 32, %v243
        %v245 = vshll.u32 %v236, %v243
        %v246 = vshrl.u32 %v228, %v244
        %v247 = vor.u32 %v245, %v246
        %v248 = vsub.s32 4294967266, %v243
        %v249 = vadd.s32 %v248, 127
        %v250 = vshll.u32 %v249, 23
        %v251 = vor.u32 4788187, %v250
        %v252 = vand.u32 2147483647, %v251
        %v254 = vcvt.s32.f32 %v247
        %v255 = vmul.f32 %v254, %v252
        %v256 = vxor.u32 %v255, 2147483648
        %v257 = vsel %vm174, %v256, %v255
        %v258 = vsub.s32 4, %v234
        %v259 = vsel %vm174, %v258, %v234
        %v260 = vsel %vm173, %v168, %v257
        %v261 = vsel %vm173, 0, %v259
        %v262 = vcosq.f32.pop %v260
        %v263 = vsinq.f32.pop %v260
        %vm264 = vweird.f32 %v168
        %v265 = vand.u32 %v261, 3
        %vm266 = vcmp.lt.s32.totalorder %v265, 2
        %vm267 = vcmp.eq.s32.totalorder %v265, 0
        %v268 = vxor.u32 %v263, 2147483648
        %v269 = vsel %vm267, %v262, %v268
        %vm270 = vcmp.eq.s32.totalorder %v265, 2
        %v271 = vxor.u32 %v262, 2147483648
        %v272 = vsel %vm270, %v271, %v263
        %v273 = vsel %vm266, %v269, %v272
        %v274 = vsel %vm264, nan, %v273
        %v275 = vand.u32 2147483647, %v169
        %vm276 = vcmp.le.f32.partialorder %v275, 0.7853982
        %vm277 = vcmp.lt.s32.totalorder %v169, 0
        %v278 = vand.u32 %v169, 2139095040
        %v279 = vshrl.u32 %v278, 23
        %v280 = vsub.s32 %v279, 127
        %v281 = vand.u32 2147483647, %v169
        %v282 = vand.u32 %v281, 8388607
        %v283 = vor.u32 %v282, 8388608
        %v284 = vsub.s32 0, %v283
        %v285 = vadd.s32 %v280, 1
        %vm286 = vcmp.gt.s32.totalorder %v285, 0
        %v287 = vsel %vm286, %v285, 0
        %v288 = vshrl.u32 %v287, 5
        %v289 = vand.u32 %v287, 31
        %v290 = vsub.s32 32, %v289
        %v291 = vshrl.u32 683565275, %v290
        %v292 = vshll.u32 683565275, %v289
        %v293 = vshrl.u32 2475754826, %v290
        %v294 = vor.u32 %v292, %v293
        %v295 = vshll.u32 2475754826, %v289
        %v296 = vshrl.u32 2131351028, %v290
        %v297 = vor.u32 %v295, %v296
        %v298 = vshll.u32 2131351028, %v289
        %v299 = vshrl.u32 2102212464, %v290
        %v300 = vor.u32 %v298, %v299
        %v301 = vshll.u32 2102212464, %v289
        %v302 = vshrl.u32 920167782, %v290
        %v303 = vor.u32 %v301, %v302
        %v304 = vshll.u32 920167782, %v289
        %v305 = vshrl.u32 1326507024, %v290
        %v306 = vor.u32 %v304, %v305
        %vm307 = vcmp.lt.s32.totalorder %v288, 1
        %vm308 = vcmp.lt.s32.totalorder %v288, 2
        %vm309 = vcmp.lt.s32.totalorder %v288, 3
        %vm310 = vcmp.lt.s32.totalorder %v288, 4
        %v311 = vsel %vm307, %v291, %v294
        %v312 = vsel %vm310, %v300, 2102212464
        %v313 = vsel %vm309, %v297, %v312
        %v314 = vsel %vm308, %v311, %v313
        %v315 = vsel %vm307, %v294, %v297
        %v316 = vsel %vm310, %v303, 920167782
        %v317 = vsel %vm309, %v300, %v316
        %v318 = vsel %vm308, %v315, %v317
        %v319 = vsel %vm307, %v297, %v300
        %v320 = vsel %vm310, %v306, 1326507024
        %v321 = vsel %vm309, %v303, %v320
        %v322 = vsel %vm308, %v319, %v321
        %v323 = vshll.u32 %v283, 8
        %v324 = vmul.u32.u64.compose %v323, %v322
        %v325 = vextract.low.u32 %v324
        %v326 = vextract.high.u32 %v324
        %v327 = vmul.u32.u64.compose %v323, %v318
        %v328 = vextract.low.u32 %v327
        %v329 = vextract.high.u32 %v327
        %v330 = vmul.u32 %v323, %v314
        %v331 = vadd.s32 %v326, %v328
        %vm332 = vc.u32 %v326, %v328
        %v333 = vadd.s32 %v329, 1
        %v334 = vsel %vm332, %v333, %v329
        %v335 = vadd.s32 %v330, %v334
        %v336 = vadd.s32 %v335, 536870912
        %v337 = vshrl.u32 %v336, 30
        %v338 = vshll.u32 %v337, 30
        %v339 = vsub.s32 %v335, %v338
        %vm340 = vcmp.lt.s32.totalorder %v339, 0
        %v341 = vsub.s32 0, %v339
        %v342 = vsel %vm340, %v341, %v339
        %v343 = vclz %v342
        %v344 = vsub.s32 %v343, 2
        %vm345 = vcmp.gt.s32.totalorder 0, %v344
        %v346 = vsel %vm345, 0, %v344
        %v347 = vsub.s32 32, %v346
        %v348 = vshll.u32 %v339, %v346
        %v349 = vshrl.u32 %v331, %v347
        %v350 = vor.u32 %v348, %v349
        %v351 = vsub.s32 4294967266, %v346
        %v352 = vadd.s32 %v351, 127
        %v353 = vshll.u32 %v352, 23
        %v354 = vor.u32 4788187, %v353
        %v355 = vand.u32 2147483647, %v354
        %v357 = vcvt.s32.f32 %v350
        %v358 = vmul.f32 %v357, %v355
        %v359 = vxor.u32 %v358, 2147483648
        %v360 = vsel %vm277, %v359, %v358
        %v361 = vsub.s32 4, %v337
        %v362 = vsel %vm277, %v361, %v337
        %v363 = vsel %vm276, %v169, %v360
        %v364 = vsel %vm276, 0, %v362
        %v365 = vcosq.f32.pop %v363
        %v366 = vsinq.f32.pop %v363
        %vm367 = vweird.f32 %v169
        %v368 = vand.u32 %v364, 3
        %vm369 = vcmp.lt.s32.totalorder %v368, 2
        %vm370 = vcmp.eq.s32.totalorder %v368, 0
        %v371 = vxor.u32 %v366, 2147483648
        %v372 = vsel %vm370, %v365, %v371
        %vm373 = vcmp.eq.s32.totalorder %v368, 2
        %v374 = vxor.u32 %v365, 2147483648
        %v375 = vsel %vm373, %v374, %v366
        %v376 = vsel %vm369, %v372, %v375
        %v377 = vsel %vm367, nan, %v376
        %v378 = vand.u32 2147483647, %v170
        %vm379 = vcmp.le.f32.partialorder %v378, 0.7853982
        %vm380 = vcmp.lt.s32.totalorder %v170, 0
        %v381 = vand.u32 %v170, 2139095040
        %v382 = vshrl.u32 %v381, 23
        %v383 = vsub.s32 %v382, 127
        %v384 = vand.u32 2147483647, %v170
        %v385 = vand.u32 %v384, 8388607
        %v386 = vor.u32 %v385, 8388608
        %v387 = vsub.s32 0, %v386
        %v388 = vadd.s32 %v383, 1
        %vm389 = vcmp.gt.s32.totalorder %v388, 0
        %v390 = vsel %vm389, %v388, 0
        %v391 = vshrl.u32 %v390, 5
        %v392 = vand.u32 %v390, 31
        %v393 = vsub.s32 32, %v392
        %v394 = vshrl.u32 683565275, %v393
        %v395 = vshll.u32 683565275, %v392
        %v396 = vshrl.u32 2475754826, %v393
        %v397 = vor.u32 %v395, %v396
        %v398 = vshll.u32 2475754826, %v392
        %v399 = vshrl.u32 2131351028, %v393
        %v400 = vor.u32 %v398, %v399
        %v401 = vshll.u32 2131351028, %v392
        %v402 = vshrl.u32 2102212464, %v393
        %v403 = vor.u32 %v401, %v402
        %v404 = vshll.u32 2102212464, %v392
        %v405 = vshrl.u32 920167782, %v393
        %v406 = vor.u32 %v404, %v405
        %v407 = vshll.u32 920167782, %v392
        %v408 = vshrl.u32 1326507024, %v393
        %v409 = vor.u32 %v407, %v408
        %vm410 = vcmp.lt.s32.totalorder %v391, 1
        %vm411 = vcmp.lt.s32.totalorder %v391, 2
        %vm412 = vcmp.lt.s32.totalorder %v391, 3
        %vm413 = vcmp.lt.s32.totalorder %v391, 4
        %v414 = vsel %vm410, %v394, %v397
        %v415 = vsel %vm413, %v403, 2102212464
        %v416 = vsel %vm412, %v400, %v415
        %v417 = vsel %vm411, %v414, %v416
        %v418 = vsel %vm410, %v397, %v400
        %v419 = vsel %vm413, %v406, 920167782
        %v420 = vsel %vm412, %v403, %v419
        %v421 = vsel %vm411, %v418, %v420
        %v422 = vsel %vm410, %v400, %v403
        %v423 = vsel %vm413, %v409, 1326507024
        %v424 = vsel %vm412, %v406, %v423
        %v425 = vsel %vm411, %v422, %v424
        %v426 = vshll.u32 %v386, 8
        %v427 = vmul.u32.u64.compose %v426, %v425
        %v428 = vextract.low.u32 %v427
        %v429 = vextract.high.u32 %v427
        %v430 = vmul.u32.u64.compose %v426, %v421
        %v431 = vextract.low.u32 %v430
        %v432 = vextract.high.u32 %v430
        %v433 = vmul.u32 %v426, %v417
        %v434 = vadd.s32 %v429, %v431
        %vm435 = vc.u32 %v429, %v431
        %v436 = vadd.s32 %v432, 1
        %v437 = vsel %vm435, %v436, %v432
        %v438 = vadd.s32 %v433, %v437
        %v439 = vadd.s32 %v438, 536870912
        %v440 = vshrl.u32 %v439, 30
        %v441 = vshll.u32 %v440, 30
        %v442 = vsub.s32 %v438, %v441
        %vm443 = vcmp.lt.s32.totalorder %v442, 0
        %v444 = vsub.s32 0, %v442
        %v445 = vsel %vm443, %v444, %v442
        %v446 = vclz %v445
        %v447 = vsub.s32 %v446, 2
        %vm448 = vcmp.gt.s32.totalorder 0, %v447
        %v449 = vsel %vm448, 0, %v447
        %v450 = vsub.s32 32, %v449
        %v451 = vshll.u32 %v442, %v449
        %v452 = vshrl.u32 %v434, %v450
        %v453 = vor.u32 %v451, %v452
        %v454 = vsub.s32 4294967266, %v449
        %v455 = vadd.s32 %v454, 127
        %v456 = vshll.u32 %v455, 23
        %v457 = vor.u32 4788187, %v456
        %v458 = vand.u32 2147483647, %v457
        %v460 = vcvt.s32.f32 %v453
        %v461 = vmul.f32 %v460, %v458
        %v462 = vxor.u32 %v461, 2147483648
        %v463 = vsel %vm380, %v462, %v461
        %v464 = vsub.s32 4, %v440
        %v465 = vsel %vm380, %v464, %v440
        %v466 = vsel %vm379, %v170, %v463
        %v467 = vsel %vm379, 0, %v465
        %v468 = vcosq.f32.pop %v466
        %v469 = vsinq.f32.pop %v466
        %vm470 = vweird.f32 %v170
        %v471 = vand.u32 %v467, 3
        %vm472 = vcmp.lt.s32.totalorder %v471, 2
        %vm473 = vcmp.eq.s32.totalorder %v471, 0
        %v474 = vxor.u32 %v469, 2147483648
        %v475 = vsel %vm473, %v468, %v474
        %vm476 = vcmp.eq.s32.totalorder %v471, 2
        %v477 = vxor.u32 %v468, 2147483648
        %v478 = vsel %vm476, %v477, %v469
        %v479 = vsel %vm472, %v475, %v478
        %v480 = vsel %vm470, nan, %v479
        %v481 = vand.u32 2147483647, %v171
        %vm482 = vcmp.le.f32.partialorder %v481, 0.7853982
        %vm483 = vcmp.lt.s32.totalorder %v171, 0
        %v484 = vand.u32 %v171, 2139095040
        %v485 = vshrl.u32 %v484, 23
        %v486 = vsub.s32 %v485, 127
        %v487 = vand.u32 2147483647, %v171
        %v488 = vand.u32 %v487, 8388607
        %v489 = vor.u32 %v488, 8388608
        %v490 = vsub.s32 0, %v489
        %v491 = vadd.s32 %v486, 1
        %vm492 = vcmp.gt.s32.totalorder %v491, 0
        %v493 = vsel %vm492, %v491, 0
        %v494 = vshrl.u32 %v493, 5
        %v495 = vand.u32 %v493, 31
        %v496 = vsub.s32 32, %v495
        %v497 = vshrl.u32 683565275, %v496
        %v498 = vshll.u32 683565275, %v495
        %v499 = vshrl.u32 2475754826, %v496
        %v500 = vor.u32 %v498, %v499
        %v501 = vshll.u32 2475754826, %v495
        %v502 = vshrl.u32 2131351028, %v496
        %v503 = vor.u32 %v501, %v502
        %v504 = vshll.u32 2131351028, %v495
        %v505 = vshrl.u32 2102212464, %v496
        %v506 = vor.u32 %v504, %v505
        %v507 = vshll.u32 2102212464, %v495
        %v508 = vshrl.u32 920167782, %v496
        %v509 = vor.u32 %v507, %v508
        %v510 = vshll.u32 920167782, %v495
        %v511 = vshrl.u32 1326507024, %v496
        %v512 = vor.u32 %v510, %v511
        %vm513 = vcmp.lt.s32.totalorder %v494, 1
        %vm514 = vcmp.lt.s32.totalorder %v494, 2
        %vm515 = vcmp.lt.s32.totalorder %v494, 3
        %vm516 = vcmp.lt.s32.totalorder %v494, 4
        %v517 = vsel %vm513, %v497, %v500
        %v518 = vsel %vm516, %v506, 2102212464
        %v519 = vsel %vm515, %v503, %v518
        %v520 = vsel %vm514, %v517, %v519
        %v521 = vsel %vm513, %v500, %v503
        %v522 = vsel %vm516, %v509, 920167782
        %v523 = vsel %vm515, %v506, %v522
        %v524 = vsel %vm514, %v521, %v523
        %v525 = vsel %vm513, %v503, %v506
        %v526 = vsel %vm516, %v512, 1326507024
        %v527 = vsel %vm515, %v509, %v526
        %v528 = vsel %vm514, %v525, %v527
        %v529 = vshll.u32 %v489, 8
        %v530 = vmul.u32.u64.compose %v529, %v528
        %v531 = vextract.low.u32 %v530
        %v532 = vextract.high.u32 %v530
        %v533 = vmul.u32.u64.compose %v529, %v524
        %v534 = vextract.low.u32 %v533
        %v535 = vextract.high.u32 %v533
        %v536 = vmul.u32 %v529, %v520
        %v537 = vadd.s32 %v532, %v534
        %vm538 = vc.u32 %v532, %v534
        %v539 = vadd.s32 %v535, 1
        %v540 = vsel %vm538, %v539, %v535
        %v541 = vadd.s32 %v536, %v540
        %v542 = vadd.s32 %v541, 536870912
        %v543 = vshrl.u32 %v542, 30
        %v544 = vshll.u32 %v543, 30
        %v545 = vsub.s32 %v541, %v544
        %vm546 = vcmp.lt.s32.totalorder %v545, 0
        %v547 = vsub.s32 0, %v545
        %v548 = vsel %vm546, %v547, %v545
        %v549 = vclz %v548
        %v550 = vsub.s32 %v549, 2
        %vm551 = vcmp.gt.s32.totalorder 0, %v550
        %v552 = vsel %vm551, 0, %v550
        %v553 = vsub.s32 32, %v552
        %v554 = vshll.u32 %v545, %v552
        %v555 = vshrl.u32 %v537, %v553
        %v556 = vor.u32 %v554, %v555
        %v557 = vsub.s32 4294967266, %v552
        %v558 = vadd.s32 %v557, 127
        %v559 = vshll.u32 %v558, 23
        %v560 = vor.u32 4788187, %v559
        %v561 = vand.u32 2147483647, %v560
        %v563 = vcvt.s32.f32 %v556
        %v564 = vmul.f32 %v563, %v561
        %v565 = vxor.u32 %v564, 2147483648
        %v566 = vsel %vm483, %v565, %v564
        %v567 = vsub.s32 4, %v543
        %v568 = vsel %vm483, %v567, %v543
        %v569 = vsel %vm482, %v171, %v566
        %v570 = vsel %vm482, 0, %v568
        %v571 = vcosq.f32.pop %v569
        %v572 = vsinq.f32.pop %v569
        %vm573 = vweird.f32 %v171
        %v574 = vand.u32 %v570, 3
        %vm575 = vcmp.lt.s32.totalorder %v574, 2
        %vm576 = vcmp.eq.s32.totalorder %v574, 0
        %v577 = vxor.u32 %v572, 2147483648
        %v578 = vsel %vm576, %v571, %v577
        %vm579 = vcmp.eq.s32.totalorder %v574, 2
        %v580 = vxor.u32 %v571, 2147483648
        %v581 = vsel %vm579, %v580, %v572
        %v582 = vsel %vm575, %v578, %v581
        %v583 = vsel %vm573, nan, %v582
        %v584 = vand.u32 2147483647, %v168
        %vm585 = vcmp.le.f32.partialorder %v584, 0.7853982
        %vm586 = vcmp.lt.s32.totalorder %v168, 0
        %v587 = vand.u32 %v168, 2139095040
        %v588 = vshrl.u32 %v587, 23
        %v589 = vsub.s32 %v588, 127
        %v590 = vand.u32 2147483647, %v168
        %v591 = vand.u32 %v590, 8388607
        %v592 = vor.u32 %v591, 8388608
        %v593 = vsub.s32 0, %v592
        %v594 = vadd.s32 %v589, 1
        %vm595 = vcmp.gt.s32.totalorder %v594, 0
        %v596 = vsel %vm595, %v594, 0
        %v597 = vshrl.u32 %v596, 5
        %v598 = vand.u32 %v596, 31
        %v599 = vsub.s32 32, %v598
        %v600 = vshrl.u32 683565275, %v599
        %v601 = vshll.u32 683565275, %v598
        %v602 = vshrl.u32 2475754826, %v599
        %v603 = vor.u32 %v601, %v602
        %v604 = vshll.u32 2475754826, %v598
        %v605 = vshrl.u32 2131351028, %v599
        %v606 = vor.u32 %v604, %v605
        %v607 = vshll.u32 2131351028, %v598
        %v608 = vshrl.u32 2102212464, %v599
        %v609 = vor.u32 %v607, %v608
        %v610 = vshll.u32 2102212464, %v598
        %v611 = vshrl.u32 920167782, %v599
        %v612 = vor.u32 %v610, %v611
        %v613 = vshll.u32 920167782, %v598
        %v614 = vshrl.u32 1326507024, %v599
        %v615 = vor.u32 %v613, %v614
        %vm616 = vcmp.lt.s32.totalorder %v597, 1
        %vm617 = vcmp.lt.s32.totalorder %v597, 2
        %vm618 = vcmp.lt.s32.totalorder %v597, 3
        %vm619 = vcmp.lt.s32.totalorder %v597, 4
        %v620 = vsel %vm616, %v600, %v603
        %v621 = vsel %vm619, %v609, 2102212464
        %v622 = vsel %vm618, %v606, %v621
        %v623 = vsel %vm617, %v620, %v622
        %v624 = vsel %vm616, %v603, %v606
        %v625 = vsel %vm619, %v612, 920167782
        %v626 = vsel %vm618, %v609, %v625
        %v627 = vsel %vm617, %v624, %v626
        %v628 = vsel %vm616, %v606, %v609
        %v629 = vsel %vm619, %v615, 1326507024
        %v630 = vsel %vm618, %v612, %v629
        %v631 = vsel %vm617, %v628, %v630
        %v632 = vshll.u32 %v592, 8
        %v633 = vmul.u32.u64.compose %v632, %v631
        %v634 = vextract.low.u32 %v633
        %v635 = vextract.high.u32 %v633
        %v636 = vmul.u32.u64.compose %v632, %v627
        %v637 = vextract.low.u32 %v636
        %v638 = vextract.high.u32 %v636
        %v639 = vmul.u32 %v632, %v623
        %v640 = vadd.s32 %v635, %v637
        %vm641 = vc.u32 %v635, %v637
        %v642 = vadd.s32 %v638, 1
        %v643 = vsel %vm641, %v642, %v638
        %v644 = vadd.s32 %v639, %v643
        %v645 = vadd.s32 %v644, 536870912
        %v646 = vshrl.u32 %v645, 30
        %v647 = vshll.u32 %v646, 30
        %v648 = vsub.s32 %v644, %v647
        %vm649 = vcmp.lt.s32.totalorder %v648, 0
        %v650 = vsub.s32 0, %v648
        %v651 = vsel %vm649, %v650, %v648
        %v652 = vclz %v651
        %v653 = vsub.s32 %v652, 2
        %vm654 = vcmp.gt.s32.totalorder 0, %v653
        %v655 = vsel %vm654, 0, %v653
        %v656 = vsub.s32 32, %v655
        %v657 = vshll.u32 %v648, %v655
        %v658 = vshrl.u32 %v640, %v656
        %v659 = vor.u32 %v657, %v658
        %v660 = vsub.s32 4294967266, %v655
        %v661 = vadd.s32 %v660, 127
        %v662 = vshll.u32 %v661, 23
        %v663 = vor.u32 4788187, %v662
        %v664 = vand.u32 2147483647, %v663
        %v666 = vcvt.s32.f32 %v659
        %v667 = vmul.f32 %v666, %v664
        %v668 = vxor.u32 %v667, 2147483648
        %v669 = vsel %vm586, %v668, %v667
        %v670 = vsub.s32 4, %v646
        %v671 = vsel %vm586, %v670, %v646
        %v672 = vsel %vm585, %v168, %v669
        %v673 = vsel %vm585, 0, %v671
        %v674 = vcosq.f32.pop %v672
        %v675 = vsinq.f32.pop %v672
        %vm676 = vweird.f32 %v168
        %v677 = vadd.s32 %v673, 3
        %v678 = vand.u32 %v677, 3
        %vm679 = vcmp.lt.s32.totalorder %v678, 2
        %vm680 = vcmp.eq.s32.totalorder %v678, 0
        %v681 = vxor.u32 %v675, 2147483648
        %v682 = vsel %vm680, %v674, %v681
        %vm683 = vcmp.eq.s32.totalorder %v678, 2
        %v684 = vxor.u32 %v674, 2147483648
        %v685 = vsel %vm683, %v684, %v675
        %v686 = vsel %vm679, %v682, %v685
        %v687 = vsel %vm676, nan, %v686
        %v688 = vand.u32 2147483647, %v169
        %vm689 = vcmp.le.f32.partialorder %v688, 0.7853982
        %vm690 = vcmp.lt.s32.totalorder %v169, 0
        %v691 = vand.u32 %v169, 2139095040
        %v692 = vshrl.u32 %v691, 23
        %v693 = vsub.s32 %v692, 127
        %v694 = vand.u32 2147483647, %v169
        %v695 = vand.u32 %v694, 8388607
        %v696 = vor.u32 %v695, 8388608
        %v697 = vsub.s32 0, %v696
        %v698 = vadd.s32 %v693, 1
        %vm699 = vcmp.gt.s32.totalorder %v698, 0
        %v700 = vsel %vm699, %v698, 0
        %v701 = vshrl.u32 %v700, 5
        %v702 = vand.u32 %v700, 31
        %v703 = vsub.s32 32, %v702
        %v704 = vshrl.u32 683565275, %v703
        %v705 = vshll.u32 683565275, %v702
        %v706 = vshrl.u32 2475754826, %v703
        %v707 = vor.u32 %v705, %v706
        %v708 = vshll.u32 2475754826, %v702
        %v709 = vshrl.u32 2131351028, %v703
        %v710 = vor.u32 %v708, %v709
        %v711 = vshll.u32 2131351028, %v702
        %v712 = vshrl.u32 2102212464, %v703
        %v713 = vor.u32 %v711, %v712
        %v714 = vshll.u32 2102212464, %v702
        %v715 = vshrl.u32 920167782, %v703
        %v716 = vor.u32 %v714, %v715
        %v717 = vshll.u32 920167782, %v702
        %v718 = vshrl.u32 1326507024, %v703
        %v719 = vor.u32 %v717, %v718
        %vm720 = vcmp.lt.s32.totalorder %v701, 1
        %vm721 = vcmp.lt.s32.totalorder %v701, 2
        %vm722 = vcmp.lt.s32.totalorder %v701, 3
        %vm723 = vcmp.lt.s32.totalorder %v701, 4
        %v724 = vsel %vm720, %v704, %v707
        %v725 = vsel %vm723, %v713, 2102212464
        %v726 = vsel %vm722, %v710, %v725
        %v727 = vsel %vm721, %v724, %v726
        %v728 = vsel %vm720, %v707, %v710
        %v729 = vsel %vm723, %v716, 920167782
        %v730 = vsel %vm722, %v713, %v729
        %v731 = vsel %vm721, %v728, %v730
        %v732 = vsel %vm720, %v710, %v713
        %v733 = vsel %vm723, %v719, 1326507024
        %v734 = vsel %vm722, %v716, %v733
        %v735 = vsel %vm721, %v732, %v734
        %v736 = vshll.u32 %v696, 8
        %v737 = vmul.u32.u64.compose %v736, %v735
        %v738 = vextract.low.u32 %v737
        %v739 = vextract.high.u32 %v737
        %v740 = vmul.u32.u64.compose %v736, %v731
        %v741 = vextract.low.u32 %v740
        %v742 = vextract.high.u32 %v740
        %v743 = vmul.u32 %v736, %v727
        %v744 = vadd.s32 %v739, %v741
        %vm745 = vc.u32 %v739, %v741
        %v746 = vadd.s32 %v742, 1
        %v747 = vsel %vm745, %v746, %v742
        %v748 = vadd.s32 %v743, %v747
        %v749 = vadd.s32 %v748, 536870912
        %v750 = vshrl.u32 %v749, 30
        %v751 = vshll.u32 %v750, 30
        %v752 = vsub.s32 %v748, %v751
        %vm753 = vcmp.lt.s32.totalorder %v752, 0
        %v754 = vsub.s32 0, %v752
        %v755 = vsel %vm753, %v754, %v752
        %v756 = vclz %v755
        %v757 = vsub.s32 %v756, 2
        %vm758 = vcmp.gt.s32.totalorder 0, %v757
        %v759 = vsel %vm758, 0, %v757
        %v760 = vsub.s32 32, %v759
        %v761 = vshll.u32 %v752, %v759
        %v762 = vshrl.u32 %v744, %v760
        %v763 = vor.u32 %v761, %v762
        %v764 = vsub.s32 4294967266, %v759
        %v765 = vadd.s32 %v764, 127
        %v766 = vshll.u32 %v765, 23
        %v767 = vor.u32 4788187, %v766
        %v768 = vand.u32 2147483647, %v767
        %v770 = vcvt.s32.f32 %v763
        %v771 = vmul.f32 %v770, %v768
        %v772 = vxor.u32 %v771, 2147483648
        %v773 = vsel %vm690, %v772, %v771
        %v774 = vsub.s32 4, %v750
        %v775 = vsel %vm690, %v774, %v750
        %v776 = vsel %vm689, %v169, %v773
        %v777 = vsel %vm689, 0, %v775
        %v778 = vcosq.f32.pop %v776
        %v779 = vsinq.f32.pop %v776
        %vm780 = vweird.f32 %v169
        %v781 = vadd.s32 %v777, 3
        %v782 = vand.u32 %v781, 3
        %vm783 = vcmp.lt.s32.totalorder %v782, 2
        %vm784 = vcmp.eq.s32.totalorder %v782, 0
        %v785 = vxor.u32 %v779, 2147483648
        %v786 = vsel %vm784, %v778, %v785
        %vm787 = vcmp.eq.s32.totalorder %v782, 2
        %v788 = vxor.u32 %v778, 2147483648
        %v789 = vsel %vm787, %v788, %v779
        %v790 = vsel %vm783, %v786, %v789
        %v791 = vsel %vm780, nan, %v790
        %v792 = vand.u32 2147483647, %v170
        %vm793 = vcmp.le.f32.partialorder %v792, 0.7853982
        %vm794 = vcmp.lt.s32.totalorder %v170, 0
        %v795 = vand.u32 %v170, 2139095040
        %v796 = vshrl.u32 %v795, 23
        %v797 = vsub.s32 %v796, 127
        %v798 = vand.u32 2147483647, %v170
        %v799 = vand.u32 %v798, 8388607
        %v800 = vor.u32 %v799, 8388608
        %v801 = vsub.s32 0, %v800
        %v802 = vadd.s32 %v797, 1
        %vm803 = vcmp.gt.s32.totalorder %v802, 0
        %v804 = vsel %vm803, %v802, 0
        %v805 = vshrl.u32 %v804, 5
        %v806 = vand.u32 %v804, 31
        %v807 = vsub.s32 32, %v806
        %v808 = vshrl.u32 683565275, %v807
        %v809 = vshll.u32 683565275, %v806
        %v810 = vshrl.u32 2475754826, %v807
        %v811 = vor.u32 %v809, %v810
        %v812 = vshll.u32 2475754826, %v806
        %v813 = vshrl.u32 2131351028, %v807
        %v814 = vor.u32 %v812, %v813
        %v815 = vshll.u32 2131351028, %v806
        %v816 = vshrl.u32 2102212464, %v807
        %v817 = vor.u32 %v815, %v816
        %v818 = vshll.u32 2102212464, %v806
        %v819 = vshrl.u32 920167782, %v807
        %v820 = vor.u32 %v818, %v819
        %v821 = vshll.u32 920167782, %v806
        %v822 = vshrl.u32 1326507024, %v807
        %v823 = vor.u32 %v821, %v822
        %vm824 = vcmp.lt.s32.totalorder %v805, 1
        %vm825 = vcmp.lt.s32.totalorder %v805, 2
        %vm826 = vcmp.lt.s32.totalorder %v805, 3
        %vm827 = vcmp.lt.s32.totalorder %v805, 4
        %v828 = vsel %vm824, %v808, %v811
        %v829 = vsel %vm827, %v817, 2102212464
        %v830 = vsel %vm826, %v814, %v829
        %v831 = vsel %vm825, %v828, %v830
        %v832 = vsel %vm824, %v811, %v814
        %v833 = vsel %vm827, %v820, 920167782
        %v834 = vsel %vm826, %v817, %v833
        %v835 = vsel %vm825, %v832, %v834
        %v836 = vsel %vm824, %v814, %v817
        %v837 = vsel %vm827, %v823, 1326507024
        %v838 = vsel %vm826, %v820, %v837
        %v839 = vsel %vm825, %v836, %v838
        %v840 = vshll.u32 %v800, 8
        %v841 = vmul.u32.u64.compose %v840, %v839
        %v842 = vextract.low.u32 %v841
        %v843 = vextract.high.u32 %v841
        %v844 = vmul.u32.u64.compose %v840, %v835
        %v845 = vextract.low.u32 %v844
        %v846 = vextract.high.u32 %v844
        %v847 = vmul.u32 %v840, %v831
        %v848 = vadd.s32 %v843, %v845
        %vm849 = vc.u32 %v843, %v845
        %v850 = vadd.s32 %v846, 1
        %v851 = vsel %vm849, %v850, %v846
        %v852 = vadd.s32 %v847, %v851
        %v853 = vadd.s32 %v852, 536870912
        %v854 = vshrl.u32 %v853, 30
        %v855 = vshll.u32 %v854, 30
        %v856 = vsub.s32 %v852, %v855
        %vm857 = vcmp.lt.s32.totalorder %v856, 0
        %v858 = vsub.s32 0, %v856
        %v859 = vsel %vm857, %v858, %v856
        %v860 = vclz %v859
        %v861 = vsub.s32 %v860, 2
        %vm862 = vcmp.gt.s32.totalorder 0, %v861
        %v863 = vsel %vm862, 0, %v861
        %v864 = vsub.s32 32, %v863
        %v865 = vshll.u32 %v856, %v863
        %v866 = vshrl.u32 %v848, %v864
        %v867 = vor.u32 %v865, %v866
        %v868 = vsub.s32 4294967266, %v863
        %v869 = vadd.s32 %v868, 127
        %v870 = vshll.u32 %v869, 23
        %v871 = vor.u32 4788187, %v870
        %v872 = vand.u32 2147483647, %v871
        %v874 = vcvt.s32.f32 %v867
        %v875 = vmul.f32 %v874, %v872
        %v876 = vxor.u32 %v875, 2147483648
        %v877 = vsel %vm794, %v876, %v875
        %v878 = vsub.s32 4, %v854
        %v879 = vsel %vm794, %v878, %v854
        %v880 = vsel %vm793, %v170, %v877
        %v881 = vsel %vm793, 0, %v879
        %v882 = vcosq.f32.pop %v880
        %v883 = vsinq.f32.pop %v880
        %vm884 = vweird.f32 %v170
        %v885 = vadd.s32 %v881, 3
        %v886 = vand.u32 %v885, 3
        %vm887 = vcmp.lt.s32.totalorder %v886, 2
        %vm888 = vcmp.eq.s32.totalorder %v886, 0
        %v889 = vxor.u32 %v883, 2147483648
        %v890 = vsel %vm888, %v882, %v889
        %vm891 = vcmp.eq.s32.totalorder %v886, 2
        %v892 = vxor.u32 %v882, 2147483648
        %v893 = vsel %vm891, %v892, %v883
        %v894 = vsel %vm887, %v890, %v893
        %v895 = vsel %vm884, nan, %v894
        %v896 = vand.u32 2147483647, %v171
        %vm897 = vcmp.le.f32.partialorder %v896, 0.7853982
        %vm898 = vcmp.lt.s32.totalorder %v171, 0
        %v899 = vand.u32 %v171, 2139095040
        %v900 = vshrl.u32 %v899, 23
        %v901 = vsub.s32 %v900, 127
        %v902 = vand.u32 2147483647, %v171
        %v903 = vand.u32 %v902, 8388607
        %v904 = vor.u32 %v903, 8388608
        %v905 = vsub.s32 0, %v904
        %v906 = vadd.s32 %v901, 1
        %vm907 = vcmp.gt.s32.totalorder %v906, 0
        %v908 = vsel %vm907, %v906, 0
        %v909 = vshrl.u32 %v908, 5
        %v910 = vand.u32 %v908, 31
        %v911 = vsub.s32 32, %v910
        %v912 = vshrl.u32 683565275, %v911
        %v913 = vshll.u32 683565275, %v910
        %v914 = vshrl.u32 2475754826, %v911
        %v915 = vor.u32 %v913, %v914
        %v916 = vshll.u32 2475754826, %v910
        %v917 = vshrl.u32 2131351028, %v911
        %v918 = vor.u32 %v916, %v917
        %v919 = vshll.u32 2131351028, %v910
        %v920 = vshrl.u32 2102212464, %v911
        %v921 = vor.u32 %v919, %v920
        %v922 = vshll.u32 2102212464, %v910
        %v923 = vshrl.u32 920167782, %v911
        %v924 = vor.u32 %v922, %v923
        %v925 = vshll.u32 920167782, %v910
        %v926 = vshrl.u32 1326507024, %v911
        %v927 = vor.u32 %v925, %v926
        %vm928 = vcmp.lt.s32.totalorder %v909, 1
        %vm929 = vcmp.lt.s32.totalorder %v909, 2
        %vm930 = vcmp.lt.s32.totalorder %v909, 3
        %vm931 = vcmp.lt.s32.totalorder %v909, 4
        %v932 = vsel %vm928, %v912, %v915
        %v933 = vsel %vm931, %v921, 2102212464
        %v934 = vsel %vm930, %v918, %v933
        %v935 = vsel %vm929, %v932, %v934
        %v936 = vsel %vm928, %v915, %v918
        %v937 = vsel %vm931, %v924, 920167782
        %v938 = vsel %vm930, %v921, %v937
        %v939 = vsel %vm929, %v936, %v938
        %v940 = vsel %vm928, %v918, %v921
        %v941 = vsel %vm931, %v927, 1326507024
        %v942 = vsel %vm930, %v924, %v941
        %v943 = vsel %vm929, %v940, %v942
        %v944 = vshll.u32 %v904, 8
        %v945 = vmul.u32.u64.compose %v944, %v943
        %v946 = vextract.low.u32 %v945
        %v947 = vextract.high.u32 %v945
        %v948 = vmul.u32.u64.compose %v944, %v939
        %v949 = vextract.low.u32 %v948
        %v950 = vextract.high.u32 %v948
        %v951 = vmul.u32 %v944, %v935
        %v952 = vadd.s32 %v947, %v949
        %vm953 = vc.u32 %v947, %v949
        %v954 = vadd.s32 %v950, 1
        %v955 = vsel %vm953, %v954, %v950
        %v956 = vadd.s32 %v951, %v955
        %v957 = vadd.s32 %v956, 536870912
        %v958 = vshrl.u32 %v957, 30
        %v959 = vshll.u32 %v958, 30
        %v960 = vsub.s32 %v956, %v959
        %vm961 = vcmp.lt.s32.totalorder %v960, 0
        %v962 = vsub.s32 0, %v960
        %v963 = vsel %vm961, %v962, %v960
        %v964 = vclz %v963
        %v965 = vsub.s32 %v964, 2
        %vm966 = vcmp.gt.s32.totalorder 0, %v965
        %v967 = vsel %vm966, 0, %v965
        %v968 = vsub.s32 32, %v967
        %v969 = vshll.u32 %v960, %v967
        %v970 = vshrl.u32 %v952, %v968
        %v971 = vor.u32 %v969, %v970
        %v972 = vsub.s32 4294967266, %v967
        %v973 = vadd.s32 %v972, 127
        %v974 = vshll.u32 %v973, 23
        %v975 = vor.u32 4788187, %v974
        %v976 = vand.u32 2147483647, %v975
        %v978 = vcvt.s32.f32 %v971
        %v979 = vmul.f32 %v978, %v976
        %v980 = vxor.u32 %v979, 2147483648
        %v981 = vsel %vm898, %v980, %v979
        %v982 = vsub.s32 4, %v958
        %v983 = vsel %vm898, %v982, %v958
        %v984 = vsel %vm897, %v171, %v981
        %v985 = vsel %vm897, 0, %v983
        %v986 = vcosq.f32.pop %v984
        %v987 = vsinq.f32.pop %v984
        %vm988 = vweird.f32 %v171
        %v989 = vadd.s32 %v985, 3
        %v990 = vand.u32 %v989, 3
        %vm991 = vcmp.lt.s32.totalorder %v990, 2
        %vm992 = vcmp.eq.s32.totalorder %v990, 0
        %v993 = vxor.u32 %v987, 2147483648
        %v994 = vsel %vm992, %v986, %v993
        %vm995 = vcmp.eq.s32.totalorder %v990, 2
        %v996 = vxor.u32 %v986, 2147483648
        %v997 = vsel %vm995, %v996, %v987
        %v998 = vsel %vm991, %v994, %v997
        %v999 = vsel %vm988, nan, %v998
        %v1000 = vsel %vm147, %v274, %v687
        %v1001 = vsel %vm148, %v377, %v791
        %v1002 = vsel %vm149, %v480, %v895
        %v1003 = vsel %vm150, %v583, %v999
        %1004 = vst [vmem:[%s129] sm:$0xff] %v1000
        %1005 = vst [vmem:[%s129 + $0x8] sm:$0xff] %v1000
        %1006 = vst [vmem:[%s129 + $0x10] sm:$0xff] %v1001
        %1007 = vst [vmem:[%s129 + $0x18] sm:$0xff] %v1001
        %1008 = vst [vmem:[%s129 + $0x20] sm:$0xff] %v1002
        %1009 = vst [vmem:[%s129 + $0x28] sm:$0xff] %v1002
        %1010 = vst [vmem:[%s129 + $0x30] sm:$0xff] %v1003
        %1011 = vst [vmem:[%s129 + $0x38] sm:$0xff] %v1003
        %s1012 = sand.u32 %s68, 1
        %s1013 = scalar_lea.sflag [#allocation3], %s1012
        %s1014 = sand.u32 %s68, 1
        %s1015 = smul.addr %s1014, 64
        %s1016 = scalar_lea.vmem [#allocation5], %s1015
        // Predicated region
        $region29: #{tpu_custom_call.1} parent=23 // pred_check
          %p1017 = pneg %p78
        $region30: #{tpu_custom_call.1} parent=23 // pred_check_branch
          %1019 = sbr.rel (%p1017) target = $region32
        $region31: #{tpu_custom_call.1} parent=23 // pred_region
          %s1020 = smul.u32 4, %s22
          %s1021 = smul.u32 2, %s23
          %s1023 = ssub.s32 1024, 1024
          %1024 = vsyncadd %s1013, %s1023
          %s1025 = smul.addr %s1020, 2
          %s1026 = sadd.s32 %s1021, %s1025
          %s1027 = smul.addr %s21, 8
          %s1028 = sadd.s32 %s1026, %s1027
          %s1029 = smul.addr %s1028, 128
          %s1030 = scalar_lea.hbm %s1, %s1029
          %s1031 = sshll.u32 %s1016, 4
          %s1032 = int_to_ptr.vmem [resolvable:$true] %s1031
          %1037 = dma.vmem_to_hbm [thread:$0]  %s1032, 1024, %s1030, %s1013, 256, 256, 16
        $region32: #{tpu_custom_call.1} parent=23 // pred_fallthru
          _
      $region24: #{tpu_custom_call.1} parent=5 // pred_fallthru
        _
      %p1038 = scmp.le.s32.totalorder 2, %s11
      // Predicated region
      $region33: #{tpu_custom_call.1} parent=5 // pred_check
        %p1039 = pneg %p1038
      $region34: #{tpu_custom_call.1} parent=5 // pred_check_branch
        %1041 = sbr.rel (%p1039) target = $region36
      $region35: #{tpu_custom_call.1} parent=5 // pred_region
        %s1042 = ssub.s32 %s11, 2
        // Predicated region
        $region37: #{tpu_custom_call.1} parent=35 // pred_check
          %p1043 = pneg %p84
        $region38: #{tpu_custom_call.1} parent=35 // pred_check_branch
          %1045 = sbr.rel (%p1043) target = $region40
        $region39: #{tpu_custom_call.1} parent=35 // pred_region
          %s1046 = sand.u32 %s69, 1
          %s1047 = scalar_lea.sflag [#allocation3], %s1046
          %s1048 = sand.u32 %s69, 1
          %s1049 = smul.addr %s1048, 64
          %s1050 = scalar_lea.vmem [#allocation5], %s1049
          %1051 = dma.done %s1047, 1024
        $region40: #{tpu_custom_call.1} parent=35 // pred_fallthru
          _
      $region36: #{tpu_custom_call.1} parent=5 // pred_fallthru
        _
    $region6: #{tpu_custom_call.1} parent=1 // loop_footer
      %s15 = sadd.s32 1, %s11
    $region7: #{tpu_custom_call.1} parent=1 // loop_footer_branch
      %10 = sbr.rel target = $region3
    $region8: #{tpu_custom_call.1} parent=1 // loop_exit
      _
    %1052 = vsyncpa [#allocation3], 1
    %s1053 = scalar_lea.sflag [#allocation3], 1
    %1054 = vsyncpa %s1053, 1
    %1055 = vsyncpa [#allocation4], 1
    %s1056 = scalar_lea.sflag [#allocation4], 1
    %1057 = vsyncpa %s1056, 1

</llo_original>
